<compile_context>
chip_gen: v7x
topology: tpu7x:2x2x1
jax: 0.10.0
libtpu: 0.0.40
codegen_flags: <defaults>
</compile_context>

<pallas_src>
import jax
import jax.numpy as jnp
from jax.experimental import pallas as pl
from jax.experimental.pallas import tpu as pltpu

LANE = 128


def _round_up(x, m):
    return (x + m - 1) // m * m


def mlp_kernel(x_ref, w_ref, b_ref, o_ref):
    # One MXU matmul (K=784, N=128) + f32 bias + sigmoid (EUP) per batch tile.
    x = x_ref[...].astype(w_ref.dtype)          # bf16 cast -> native MXU path
    y = jnp.dot(x, w_ref[...], preferred_element_type=jnp.float32) + b_ref[...]
    o_ref[...] = jax.nn.sigmoid(y)


def fold_params(params, *, weight_dtype=jnp.bfloat16):
    """Collapse fc0->fc1->fc2 (no hidden activations) into one affine map.

    Only the class axis is padded (10 -> 128) for a lane-dense output; the
    contraction axis stays 784 (full-extent BlockSpec dim, no x repack)."""
    w_eff = params["w0t"] @ params["w1t"] @ params["w2t"]                 # (784, 10)
    b_eff = (params["b0"] @ params["w1t"] @ params["w2t"]
             + params["b1"] @ params["w2t"]
             + params["b2"])                                              # (1, 10)
    k, n = w_eff.shape
    n_pad = _round_up(n, LANE)
    w_pad = jnp.zeros((k, n_pad), weight_dtype).at[:, :n].set(
        w_eff.astype(weight_dtype))
    b_pad = jnp.zeros((1, n_pad), jnp.float32).at[:, :n].set(b_eff)       # f32 bias
    return w_pad, b_pad


def _pallas_forward(x, w_pad, b_pad, *, block_b):
    B, K = x.shape
    n_pad = w_pad.shape[1]

    # Batch tile: multiple of 8 (f32 sublane); aim for >= 2 grid steps so the
    # "parallel" batch axis can shard across v7x's 2 TensorCores, capped by
    # block_b to bound VMEM.  The last partial block is clipped by Pallas.
    tb = max(8, min(_round_up(block_b, 8), _round_up(pl.cdiv(B, 2), 8)))
    grid = (pl.cdiv(B, tb),)

    # Double-buffered x + out tiles, resident weights/bias, + 2 MiB headroom.
    x_item = jnp.dtype(x.dtype).itemsize
    w_item = jnp.dtype(w_pad.dtype).itemsize
    vmem_need = (2 * tb * K * x_item + 2 * tb * n_pad * 4
                 + 2 * K * n_pad * w_item + 2 * n_pad * 4)
    vmem_limit = min(max(vmem_need + (2 << 20), 32 << 20), 64 << 20)

    return pl.pallas_call(
        mlp_kernel,
        out_shape=jax.ShapeDtypeStruct((B, n_pad), jnp.float32),
        grid_spec=pltpu.PrefetchScalarGridSpec(
            num_scalar_prefetch=0,
            grid=grid,
            in_specs=[
                # x streams tile-by-tile straight from HBM (auto double-buffered).
                pl.BlockSpec((tb, K), lambda i: (i, 0)),
                # Weights / bias: constant index_map -> fetched once, stay
                # VMEM-resident across grid steps. (Single-buffering them via
                # pipeline_mode=pl.Buffered(1) was skipped: ~0.2 MiB, negligible.)
                pl.BlockSpec((K, n_pad), lambda i: (0, 0)),
                pl.BlockSpec((1, n_pad), lambda i: (0, 0)),
            ],
            out_specs=pl.BlockSpec((tb, n_pad), lambda i: (i, 0)),
        ),
        compiler_params=pltpu.CompilerParams(
            dimension_semantics=("parallel",),
            vmem_limit_bytes=vmem_limit),
    )(x, w_pad, b_pad)


def make_mnist_forward(params, *, weight_dtype=jnp.bfloat16, block_b=1024):
    """Fold + pad the weights ONCE; return a jitted forward: x (B,784) -> (B,10)."""
    w_pad, b_pad = fold_params(params, weight_dtype=weight_dtype)
    num_classes = params["w2t"].shape[1]

    @jax.jit
    def forward(x):
        out = _pallas_forward(x, w_pad, b_pad, block_b=block_b)
        return out[:, :num_classes]

    return forward


def init_params(key, input_size=784, num_classes=10):
    """Deterministic init mirroring nn.Linear default (U(-1/sqrt(fan_in), +)).
    Weights stored already transposed: (in, out)."""
    dims = [(input_size, 30), (30, 20), (20, num_classes)]
    params = {}
    for idx, (fan_in, fan_out) in enumerate(dims):
        key, kw, kb = jax.random.split(key, 3)
        bound = 1.0 / jnp.sqrt(jnp.float32(fan_in))
        params[f"w{idx}t"] = jax.random.uniform(
            kw, (fan_in, fan_out), jnp.float32, -bound, bound)
        params[f"b{idx}"] = jax.random.uniform(
            kb, (1, fan_out), jnp.float32, -bound, bound)
    return params


def _reference(x, params):
    # Plain-JAX reference with the ORIGINAL (unfolded) three-layer chain.
    h = x @ params["w0t"] + params["b0"]
    h = h @ params["w1t"] + params["b1"]
    h = h @ params["w2t"] + params["b2"]
    return jax.nn.sigmoid(h)


if __name__ == "__main__":
    key = jax.random.PRNGKey(0)
    key, kx1, kx2 = jax.random.split(key, 3)

    input_size, num_classes = 784, 10
    params = init_params(key, input_size, num_classes)

    # (a) Small batch, f32 weights: tight check vs. the unfolded 3-layer chain.
    fwd_f32 = make_mnist_forward(params, weight_dtype=jnp.float32)
    x_small = jax.random.normal(kx1, (4, input_size), jnp.float32)
    out_small = jax.block_until_ready(fwd_f32(x_small))
    assert out_small.shape == (4, num_classes)
    assert jnp.allclose(out_small, _reference(x_small, params),
                        atol=1e-4, rtol=1e-4)

    # (b) Non-tile-aligned batch, default bf16 weights (fast path), multi-step
    #     grid exercising the partial-last-block clipping path.
    fwd_bf16 = make_mnist_forward(params, block_b=128)
    x_big = jax.random.normal(kx2, (300, input_size), jnp.float32)
    out_big = jax.block_until_ready(fwd_bf16(x_big))
    assert out_big.shape == (300, num_classes)
    # bf16 matmul inputs (f32 accumulate) -> looser tolerance on the [0,1] sigmoid.
    assert jnp.allclose(out_big, _reference(x_big, params), atol=5e-3, rtol=0)

    print("KERNEL_OK")
</pallas_src>

<mosaic_0001>
module attributes {stable_mosaic.version = 11 : i64} {
  func.func @mlp_kernel(%arg0: i32, %arg1: memref<8x784xf32, #tpu.memory_space<vmem>>, %arg2: memref<784x128xf32, #tpu.memory_space<vmem>>, %arg3: memref<1x128xf32, #tpu.memory_space<vmem>>, %arg4: memref<8x128xf32, #tpu.memory_space<vmem>>) attributes {dimension_semantics = [#tpu.dimension_semantics<parallel>], iteration_bounds = array<i64: 1>, scalar_prefetch = 0 : i64, scratch_operands = 0 : i64, tpu.core_type = #tpu.core_type<tc>, window_params = [{transform_indices = @transform_0, window_bounds = array<i64: 8, 784>}, {pipeline_mode = #tpu.pipeline_mode<synchronous>, transform_indices = @transform_1, window_bounds = array<i64: 784, 128>}, {pipeline_mode = #tpu.pipeline_mode<synchronous>, transform_indices = @transform_2, window_bounds = array<i64: 1, 128>}, {transform_indices = @transform_3, window_bounds = array<i64: 8, 128>}]} {
    %c0 = arith.constant 0 : index
    %c0_0 = arith.constant 0 : index
    %0 = vector.load %arg1[%c0, %c0_0] : memref<8x784xf32, #tpu.memory_space<vmem>>, vector<8x784xf32>
    %c0_1 = arith.constant 0 : index
    %c0_2 = arith.constant 0 : index
    %1 = vector.load %arg2[%c0_1, %c0_2] : memref<784x128xf32, #tpu.memory_space<vmem>>, vector<784x128xf32>
    %cst = arith.constant dense<0.000000e+00> : vector<8x128xf32>
    %2 = tpu.matmul %0, %1, %cst {dimension_numbers = #tpu.dot_dimension_numbers<[1], [0], [0], [1], [0, 0, 1, 1], [], []>} : vector<8x784xf32>, vector<784x128xf32>, vector<8x128xf32> -> vector<8x128xf32>
    %c0_3 = arith.constant 0 : index
    %c0_4 = arith.constant 0 : index
    %3 = vector.load %arg3[%c0_3, %c0_4] : memref<1x128xf32, #tpu.memory_space<vmem>>, vector<1x128xf32>
    %4 = vector.broadcast %3 : vector<1x128xf32> to vector<8x128xf32>
    %5 = arith.addf %2, %4 : vector<8x128xf32>
    %6 = arith.negf %5 : vector<8x128xf32>
    %7 = math.exp %6 : vector<8x128xf32>
    %cst_5 = arith.constant 1.000000e+00 : f32
    %8 = vector.broadcast %cst_5 : f32 to vector<8x128xf32>
    %9 = arith.addf %8, %7 : vector<8x128xf32>
    %10 = arith.divf %8, %9 : vector<8x128xf32>
    %c0_6 = arith.constant 0 : index
    %c0_7 = arith.constant 0 : index
    %11 = vector.load %arg4[%c0_6, %c0_7] : memref<8x128xf32, #tpu.memory_space<vmem>>, vector<8x128xf32>
    tpu.vector_store %arg4[%c0_6, %c0_7], %10 {strides = array<i32>} : memref<8x128xf32, #tpu.memory_space<vmem>>, vector<8x128xf32>,
    return
  }
  func.func @transform_0(%arg0: i32) -> (i32, i32) {
    %c0_i32 = arith.constant 0 : i32
    %c0_i32_0 = arith.constant 0 : i32
    return %arg0, %c0_i32 : i32, i32
  }
  func.func @transform_1(%arg0: i32) -> (i32, i32) {
    %c0_i32 = arith.constant 0 : i32
    %c0_i32_0 = arith.constant 0 : i32
    %c0_i32_1 = arith.constant 0 : i32
    return %c0_i32, %c0_i32_0 : i32, i32
  }
  func.func @transform_2(%arg0: i32) -> (i32, i32) {
    %c0_i32 = arith.constant 0 : i32
    %c0_i32_0 = arith.constant 0 : i32
    %c0_i32_1 = arith.constant 0 : i32
    return %c0_i32, %c0_i32_0 : i32, i32
  }
  func.func @transform_3(%arg0: i32) -> (i32, i32) {
    %c0_i32 = arith.constant 0 : i32
    %c0_i32_0 = arith.constant 0 : i32
    return %arg0, %c0_i32 : i32, i32
  }
}

</mosaic_0001>

<llo_original>
// kernel: forward.1
$region0: #{forward.1}
  #allocation0 [shape = 'u32[]', space=smem, size = 0x4, offset = 0x4, fixed_abs, tag = 'smem constant byte address 0x4 - core index']
  #allocation1 [shape = 'u32[144,128]{1,0:T(1,128)}', space=vmem, size = 0x12000, scoped, tag = 'internal scratch']
  %s0 = inlined_call_operand.hbm [shape: f32[4,784], index: 0, kind: input, shape index: {}]
  %s1 = inlined_call_operand.hbm [shape: f32[784,128], index: 1, kind: input, shape index: {}]
  %s2 = inlined_call_operand.vmem [shape: f32[1,128], index: 2, kind: input, shape index: {}]
  %s3 = inlined_call_operand.hbm [shape: f32[4,128], index: 3, kind: output, shape index: {}]
  %s4 = sld [smem:[#allocation0]]
  $region30: #{forward.1} parent=0
    _
  %s6 = ssub.s32 1, %s4
  %s7 = scalar_select 0, %s6, %s4
  $region1: #{forward.1} parent=0
    #allocation2 [shape = 'u8[28672]{0}', space=vmem, size = 0x7000, scoped, tag = 'input window, operand 0, single buffered']
    #allocation3 [shape = 's32[1]{0}', space=sflag, size = 0x4, scoped, tag = 'scoped memory for forward.1']
    #allocation4 [shape = 's32[1]{0}', space=sflag, size = 0x4, scoped, tag = 'scoped memory for forward.1']
    #allocation5 [shape = 'u8[401408]{0}', space=vmem, size = 0x62000, scoped, tag = 'input window, operand 1, single buffered']
    #allocation6 [shape = 's32[1]{0}', space=sflag, size = 0x4, scoped, tag = 'scoped memory for forward.1']
    #allocation7 [shape = 'u8[4096]{0}', space=vmem, size = 0x1000, scoped, tag = 'output window, operand 0, single buffered']
    %8 = vsyncpa [#allocation3], 0
    %9 = vsyncpa [#allocation6], 0
    %10 = vsyncpa [#allocation4], 0
    // Predicated region
    $region2: #{forward.1} parent=1 // pred_check
      _
    $region3: #{forward.1} parent=1 // pred_check_branch
      %12 = sbr.rel (0) target = $region5
    $region4: #{forward.1} parent=1 // pred_region
      %s14 = ssub.s32 896, 448
      %15 = vsyncadd [#allocation3], %s14
      %s16 = sshll.u32 [#allocation2], 4
      %s17 = int_to_ptr.vmem [resolvable:$true] %s16
      %22 = dma.hbm_to_vmem [thread:$0]  %s0, 448, %s17, [#allocation3], 448, 448, 28
    $region5: #{forward.1} parent=1 // pred_fallthru
      _
    // Predicated region
    $region6: #{forward.1} parent=1 // pred_check
      _
    $region7: #{forward.1} parent=1 // pred_check_branch
      %24 = sbr.rel (0) target = $region9
    $region8: #{forward.1} parent=1 // pred_region
      %s26 = ssub.s32 12544, 12544
      %27 = vsyncadd [#allocation6], %s26
      %s28 = sshll.u32 [#allocation5], 4
      %s29 = int_to_ptr.vmem [resolvable:$true] %s28
      %34 = dma.hbm_to_vmem [thread:$0]  %s1, 12544, %s29, [#allocation6], 128, 128, 8
    $region9: #{forward.1} parent=1 // pred_fallthru
      _
    // Predicated region
    $region10: #{forward.1} parent=1 // pred_check
      _
    $region11: #{forward.1} parent=1 // pred_check_branch
      %36 = sbr.rel (0) target = $region13
    $region12: #{forward.1} parent=1 // pred_region
      _
    $region13: #{forward.1} parent=1 // pred_fallthru
      _
    // Predicated region
    $region14: #{forward.1} parent=1 // pred_check
      _
    $region15: #{forward.1} parent=1 // pred_check_branch
      %38 = sbr.rel (0) target = $region17
    $region16: #{forward.1} parent=1 // pred_region
      %39 = dma.done [#allocation3], 896
    $region17: #{forward.1} parent=1 // pred_fallthru
      _
    // Predicated region
    $region18: #{forward.1} parent=1 // pred_check
      _
    $region19: #{forward.1} parent=1 // pred_check_branch
      %41 = sbr.rel (0) target = $region21
    $region20: #{forward.1} parent=1 // pred_region
      %42 = dma.done [#allocation6], 12544
    $region21: #{forward.1} parent=1 // pred_fallthru
      _
    %v43 = vld [vmem:[#allocation2] sm:$0xff]
    %v44 = vld [vmem:[#allocation2 + $0x8] sm:$0xff]
    %v45 = vld [vmem:[#allocation2 + $0x10] sm:$0xff]
    %v46 = vld [vmem:[#allocation2 + $0x18] sm:$0xf]
    %v47 = vld [vmem:[#allocation2 + $0x1c] sm:$0xff]
    %v48 = vld [vmem:[#allocation2 + $0x24] sm:$0xff]
    %v49 = vld [vmem:[#allocation2 + $0x2c] sm:$0xff]
    %v50 = vld [vmem:[#allocation2 + $0x34] sm:$0xf]
    %v51 = vld [vmem:[#allocation5] sm:$0xff]
    %v52 = vld [vmem:[#allocation5 + $0x8] sm:$0xff]
    %v53 = vld [vmem:[#allocation5 + $0x10] sm:$0xff]
    %v54 = vld [vmem:[#allocation5 + $0x18] sm:$0xff]
    %v55 = vld [vmem:[#allocation5 + $0x20] sm:$0xff]
    %v56 = vld [vmem:[#allocation5 + $0x28] sm:$0xff]
    %v57 = vld [vmem:[#allocation5 + $0x30] sm:$0xff]
    %v58 = vld [vmem:[#allocation5 + $0x38] sm:$0xff]
    %v59 = vld [vmem:[#allocation5 + $0x40] sm:$0xff]
    %v60 = vld [vmem:[#allocation5 + $0x48] sm:$0xff]
    %v61 = vld [vmem:[#allocation5 + $0x50] sm:$0xff]
    %v62 = vld [vmem:[#allocation5 + $0x58] sm:$0xff]
    %v63 = vld [vmem:[#allocation5 + $0x60] sm:$0xff]
    %v64 = vld [vmem:[#allocation5 + $0x68] sm:$0xff]
    %v65 = vld [vmem:[#allocation5 + $0x70] sm:$0xff]
    %v66 = vld [vmem:[#allocation5 + $0x78] sm:$0xff]
    %v67 = vld [vmem:[#allocation5 + $0x80] sm:$0xff]
    %v68 = vld [vmem:[#allocation5 + $0x88] sm:$0xff]
    %v69 = vld [vmem:[#allocation5 + $0x90] sm:$0xff]
    %v70 = vld [vmem:[#allocation5 + $0x98] sm:$0xff]
    %v71 = vld [vmem:[#allocation5 + $0xa0] sm:$0xff]
    %v72 = vld [vmem:[#allocation5 + $0xa8] sm:$0xff]
    %v73 = vld [vmem:[#allocation5 + $0xb0] sm:$0xff]
    %v74 = vld [vmem:[#allocation5 + $0xb8] sm:$0xff]
    %v75 = vld [vmem:[#allocation5 + $0xc0] sm:$0xff]
    %v76 = vld [vmem:[#allocation5 + $0xc8] sm:$0xff]
    %v77 = vld [vmem:[#allocation5 + $0xd0] sm:$0xff]
    %v78 = vld [vmem:[#allocation5 + $0xd8] sm:$0xff]
    %v79 = vld [vmem:[#allocation5 + $0xe0] sm:$0xff]
    %v80 = vld [vmem:[#allocation5 + $0xe8] sm:$0xff]
    %v81 = vld [vmem:[#allocation5 + $0xf0] sm:$0xff]
    %v82 = vld [vmem:[#allocation5 + $0xf8] sm:$0xff]
    %v83 = vld [vmem:[#allocation5 + $0x100] sm:$0xff]
    %v84 = vld [vmem:[#allocation5 + $0x108] sm:$0xff]
    %v85 = vld [vmem:[#allocation5 + $0x110] sm:$0xff]
    %v86 = vld [vmem:[#allocation5 + $0x118] sm:$0xff]
    %v87 = vld [vmem:[#allocation5 + $0x120] sm:$0xff]
    %v88 = vld [vmem:[#allocation5 + $0x128] sm:$0xff]
    %v89 = vld [vmem:[#allocation5 + $0x130] sm:$0xff]
    %v90 = vld [vmem:[#allocation5 + $0x138] sm:$0xff]
    %v91 = vld [vmem:[#allocation5 + $0x140] sm:$0xff]
    %v92 = vld [vmem:[#allocation5 + $0x148] sm:$0xff]
    %v93 = vld [vmem:[#allocation5 + $0x150] sm:$0xff]
    %v94 = vld [vmem:[#allocation5 + $0x158] sm:$0xff]
    %v95 = vld [vmem:[#allocation5 + $0x160] sm:$0xff]
    %v96 = vld [vmem:[#allocation5 + $0x168] sm:$0xff]
    %v97 = vld [vmem:[#allocation5 + $0x170] sm:$0xff]
    %v98 = vld [vmem:[#allocation5 + $0x178] sm:$0xff]
    %v99 = vld [vmem:[#allocation5 + $0x180] sm:$0xff]
    %v100 = vld [vmem:[#allocation5 + $0x188] sm:$0xff]
    %v101 = vld [vmem:[#allocation5 + $0x190] sm:$0xff]
    %v102 = vld [vmem:[#allocation5 + $0x198] sm:$0xff]
    %v103 = vld [vmem:[#allocation5 + $0x1a0] sm:$0xff]
    %v104 = vld [vmem:[#allocation5 + $0x1a8] sm:$0xff]
    %v105 = vld [vmem:[#allocation5 + $0x1b0] sm:$0xff]
    %v106 = vld [vmem:[#allocation5 + $0x1b8] sm:$0xff]
    %v107 = vld [vmem:[#allocation5 + $0x1c0] sm:$0xff]
    %v108 = vld [vmem:[#allocation5 + $0x1c8] sm:$0xff]
    %v109 = vld [vmem:[#allocation5 + $0x1d0] sm:$0xff]
    %v110 = vld [vmem:[#allocation5 + $0x1d8] sm:$0xff]
    %v111 = vld [vmem:[#allocation5 + $0x1e0] sm:$0xff]
    %v112 = vld [vmem:[#allocation5 + $0x1e8] sm:$0xff]
    %v113 = vld [vmem:[#allocation5 + $0x1f0] sm:$0xff]
    %v114 = vld [vmem:[#allocation5 + $0x1f8] sm:$0xff]
    %v115 = vld [vmem:[#allocation5 + $0x200] sm:$0xff]
    %v116 = vld [vmem:[#allocation5 + $0x208] sm:$0xff]
    %v117 = vld [vmem:[#allocation5 + $0x210] sm:$0xff]
    %v118 = vld [vmem:[#allocation5 + $0x218] sm:$0xff]
    %v119 = vld [vmem:[#allocation5 + $0x220] sm:$0xff]
    %v120 = vld [vmem:[#allocation5 + $0x228] sm:$0xff]
    %v121 = vld [vmem:[#allocation5 + $0x230] sm:$0xff]
    %v122 = vld [vmem:[#allocation5 + $0x238] sm:$0xff]
    %v123 = vld [vmem:[#allocation5 + $0x240] sm:$0xff]
    %v124 = vld [vmem:[#allocation5 + $0x248] sm:$0xff]
    %v125 = vld [vmem:[#allocation5 + $0x250] sm:$0xff]
    %v126 = vld [vmem:[#allocation5 + $0x258] sm:$0xff]
    %v127 = vld [vmem:[#allocation5 + $0x260] sm:$0xff]
    %v128 = vld [vmem:[#allocation5 + $0x268] sm:$0xff]
    %v129 = vld [vmem:[#allocation5 + $0x270] sm:$0xff]
    %v130 = vld [vmem:[#allocation5 + $0x278] sm:$0xff]
    %v131 = vld [vmem:[#allocation5 + $0x280] sm:$0xff]
    %v132 = vld [vmem:[#allocation5 + $0x288] sm:$0xff]
    %v133 = vld [vmem:[#allocation5 + $0x290] sm:$0xff]
    %v134 = vld [vmem:[#allocation5 + $0x298] sm:$0xff]
    %v135 = vld [vmem:[#allocation5 + $0x2a0] sm:$0xff]
    %v136 = vld [vmem:[#allocation5 + $0x2a8] sm:$0xff]
    %v137 = vld [vmem:[#allocation5 + $0x2b0] sm:$0xff]
    %v138 = vld [vmem:[#allocation5 + $0x2b8] sm:$0xff]
    %v139 = vld [vmem:[#allocation5 + $0x2c0] sm:$0xff]
    %v140 = vld [vmem:[#allocation5 + $0x2c8] sm:$0xff]
    %v141 = vld [vmem:[#allocation5 + $0x2d0] sm:$0xff]
    %v142 = vld [vmem:[#allocation5 + $0x2d8] sm:$0xff]
    %v143 = vld [vmem:[#allocation5 + $0x2e0] sm:$0xff]
    %v144 = vld [vmem:[#allocation5 + $0x2e8] sm:$0xff]
    %v145 = vld [vmem:[#allocation5 + $0x2f0] sm:$0xff]
    %v146 = vld [vmem:[#allocation5 + $0x2f8] sm:$0xff]
    %v147 = vld [vmem:[#allocation5 + $0x300] sm:$0xff]
    %v148 = vld [vmem:[#allocation5 + $0x308] sm:$0xff]
    %v149 = vld [vmem:[%s2] sm:$0x1]
    %v151 = vlaneseq
    %v152 = vshrl.u32 %v151, 7
    %v153 = vsub.s32 0, %v152
    %v154 = vrot.slane %v149, %v153
    %v164 = vcombine.low %v43, %v47
    %v165 = vcombine.high %v43, %v47
    %v166 = vcombine.low %v44, %v48
    %v167 = vcombine.high %v44, %v48
    %v168 = vcombine.low %v45, %v49
    %v169 = vcombine.high %v45, %v49
    %v170 = vcombine.low %v46, %v50
    %vm177 = vcmask 130048
    %v178 = vsel %vm177, %v170, 0
    %180 = vmatprep.subr.mxu0 0.0
    %181 = vmatpush1.msra.mxu0 %v51
    %182 = vmatprep.subr.mxu0 0.0
    %183 = vmatpush1.msra.mxu0 %v52
    %184 = vmatprep.subr.mxu0 0.0
    %185 = vmatpush1.msra.mxu0 %v53
    %186 = vmatprep.subr.mxu0 0.0
    %187 = vmatpush1.msra.mxu0 %v54
    %188 = vmatprep.subr.mxu0 0.0
    %189 = vmatpush1.msra.mxu0 %v55
    %190 = vmatprep.subr.mxu0 0.0
    %191 = vmatpush1.msra.mxu0 %v56
    %192 = vmatprep.subr.mxu0 0.0
    %193 = vmatpush1.msra.mxu0 %v57
    %194 = vmatprep.subr.mxu0 0.0
    %195 = vmatpush1.msra.mxu0 %v58
    %196 = vmatprep.subr.mxu0 0.0
    %197 = vmatpush1.msra.mxu0 %v59
    %198 = vmatprep.subr.mxu0 0.0
    %199 = vmatpush1.msra.mxu0 %v60
    %200 = vmatprep.subr.mxu0 0.0
    %201 = vmatpush1.msra.mxu0 %v61
    %202 = vmatprep.subr.mxu0 0.0
    %203 = vmatpush1.msra.mxu0 %v62
    %204 = vmatprep.subr.mxu0 0.0
    %205 = vmatpush1.msra.mxu0 %v63
    %206 = vmatprep.subr.mxu0 0.0
    %207 = vmatpush1.msra.mxu0 %v64
    %208 = vmatprep.subr.mxu0 0.0
    %209 = vmatpush1.msra.mxu0 %v65
    %210 = vmatprep.subr.mxu0 0.0
    %211 = vmatpush1.msra.mxu0 %v66
    %212 = vmatprep.subr.mxu0 0.0
    %213 = vmatpush1.msra.mxu0 %v67
    %214 = vmatprep.subr.mxu0 0.0
    %215 = vmatpush1.msra.mxu0 %v68
    %216 = vmatprep.subr.mxu0 0.0
    %217 = vmatpush1.msra.mxu0 %v69
    %218 = vmatprep.subr.mxu0 0.0
    %219 = vmatpush1.msra.mxu0 %v70
    %220 = vmatprep.subr.mxu0 0.0
    %221 = vmatpush1.msra.mxu0 %v71
    %222 = vmatprep.subr.mxu0 0.0
    %223 = vmatpush1.msra.mxu0 %v72
    %224 = vmatprep.subr.mxu0 0.0
    %225 = vmatpush1.msra.mxu0 %v73
    %226 = vmatprep.subr.mxu0 0.0
    %227 = vmatpush1.msra.mxu0 %v74
    %228 = vmatprep.subr.mxu0 0.0
    %229 = vmatpush1.msra.mxu0 %v75
    %230 = vmatprep.subr.mxu0 0.0
    %231 = vmatpush1.msra.mxu0 %v76
    %232 = vmatprep.subr.mxu0 0.0
    %233 = vmatpush1.msra.mxu0 %v77
    %234 = vmatprep.subr.mxu0 0.0
    %235 = vmatpush1.msra.mxu0 %v78
    %236 = vmatprep.subr.mxu0 0.0
    %237 = vmatpush1.msra.mxu0 %v79
    %238 = vmatprep.subr.mxu0 0.0
    %239 = vmatpush1.msra.mxu0 %v80
    %240 = vmatprep.subr.mxu0 0.0
    %241 = vmatpush1.msra.mxu0 %v81
    %242 = vmatprep.subr.mxu0 0.0
    %243 = vmatpush1.msra.mxu0 %v82
    %244 = vmatprep.mubr.f32.mxu0 %v165
    %245 = vmatmul.mubr.f32.gmra.mrb[0].mxu0 %v164
    %v246 = vpop.f32.mrb[0].mxu0
    %v247 = vadd.f32 %v154, %v246
    %v248 = vpop.f32.mrb[0].mxu0
    %249 = vdwg.mxu0
    %250 = vmatprep.subr.mxu0 0.0
    %251 = vmatpush1.msra.mxu0 %v83
    %252 = vmatprep.subr.mxu0 0.0
    %253 = vmatpush1.msra.mxu0 %v84
    %254 = vmatprep.subr.mxu0 0.0
    %255 = vmatpush1.msra.mxu0 %v85
    %256 = vmatprep.subr.mxu0 0.0
    %257 = vmatpush1.msra.mxu0 %v86
    %258 = vmatprep.subr.mxu0 0.0
    %259 = vmatpush1.msra.mxu0 %v87
    %260 = vmatprep.subr.mxu0 0.0
    %261 = vmatpush1.msra.mxu0 %v88
    %262 = vmatprep.subr.mxu0 0.0
    %263 = vmatpush1.msra.mxu0 %v89
    %264 = vmatprep.subr.mxu0 0.0
    %265 = vmatpush1.msra.mxu0 %v90
    %266 = vmatprep.subr.mxu0 0.0
    %267 = vmatpush1.msra.mxu0 %v91
    %268 = vmatprep.subr.mxu0 0.0
    %269 = vmatpush1.msra.mxu0 %v92
    %270 = vmatprep.subr.mxu0 0.0
    %271 = vmatpush1.msra.mxu0 %v93
    %272 = vmatprep.subr.mxu0 0.0
    %273 = vmatpush1.msra.mxu0 %v94
    %274 = vmatprep.subr.mxu0 0.0
    %275 = vmatpush1.msra.mxu0 %v95
    %276 = vmatprep.subr.mxu0 0.0
    %277 = vmatpush1.msra.mxu0 %v96
    %278 = vmatprep.subr.mxu0 0.0
    %279 = vmatpush1.msra.mxu0 %v97
    %280 = vmatprep.subr.mxu0 0.0
    %281 = vmatpush1.msra.mxu0 %v98
    %282 = vmatprep.subr.mxu0 0.0
    %283 = vmatpush1.msra.mxu0 %v99
    %284 = vmatprep.subr.mxu0 0.0
    %285 = vmatpush1.msra.mxu0 %v100
    %286 = vmatprep.subr.mxu0 0.0
    %287 = vmatpush1.msra.mxu0 %v101
    %288 = vmatprep.subr.mxu0 0.0
    %289 = vmatpush1.msra.mxu0 %v102
    %290 = vmatprep.subr.mxu0 0.0
    %291 = vmatpush1.msra.mxu0 %v103
    %292 = vmatprep.subr.mxu0 0.0
    %293 = vmatpush1.msra.mxu0 %v104
    %294 = vmatprep.subr.mxu0 0.0
    %295 = vmatpush1.msra.mxu0 %v105
    %296 = vmatprep.subr.mxu0 0.0
    %297 = vmatpush1.msra.mxu0 %v106
    %298 = vmatprep.subr.mxu0 0.0
    %299 = vmatpush1.msra.mxu0 %v107
    %300 = vmatprep.subr.mxu0 0.0
    %301 = vmatpush1.msra.mxu0 %v108
    %302 = vmatprep.subr.mxu0 0.0
    %303 = vmatpush1.msra.mxu0 %v109
    %304 = vmatprep.subr.mxu0 0.0
    %305 = vmatpush1.msra.mxu0 %v110
    %306 = vmatprep.subr.mxu0 0.0
    %307 = vmatpush1.msra.mxu0 %v111
    %308 = vmatprep.subr.mxu0 0.0
    %309 = vmatpush1.msra.mxu0 %v112
    %310 = vmatprep.subr.mxu0 0.0
    %311 = vmatpush1.msra.mxu0 %v113
    %312 = vmatprep.subr.mxu0 0.0
    %313 = vmatpush1.msra.mxu0 %v114
    %314 = vmatprep.mubr.f32.mxu0 %v167
    %315 = vmatmul.mubr.f32.gmra.mrb[0].mxu0 %v166
    %v316 = vpop.f32.mrb[0].mxu0
    %v317 = vadd.f32 %v247, %v316
    %v318 = vpop.f32.mrb[0].mxu0
    %319 = vdwg.mxu0
    %320 = vmatprep.subr.mxu0 0.0
    %321 = vmatpush1.msra.mxu0 %v115
    %322 = vmatprep.subr.mxu0 0.0
    %323 = vmatpush1.msra.mxu0 %v116
    %324 = vmatprep.subr.mxu0 0.0
    %325 = vmatpush1.msra.mxu0 %v117
    %326 = vmatprep.subr.mxu0 0.0
    %327 = vmatpush1.msra.mxu0 %v118
    %328 = vmatprep.subr.mxu0 0.0
    %329 = vmatpush1.msra.mxu0 %v119
    %330 = vmatprep.subr.mxu0 0.0
    %331 = vmatpush1.msra.mxu0 %v120
    %332 = vmatprep.subr.mxu0 0.0
    %333 = vmatpush1.msra.mxu0 %v121
    %334 = vmatprep.subr.mxu0 0.0
    %335 = vmatpush1.msra.mxu0 %v122
    %336 = vmatprep.subr.mxu0 0.0
    %337 = vmatpush1.msra.mxu0 %v123
    %338 = vmatprep.subr.mxu0 0.0
    %339 = vmatpush1.msra.mxu0 %v124
    %340 = vmatprep.subr.mxu0 0.0
    %341 = vmatpush1.msra.mxu0 %v125
    %342 = vmatprep.subr.mxu0 0.0
    %343 = vmatpush1.msra.mxu0 %v126
    %344 = vmatprep.subr.mxu0 0.0
    %345 = vmatpush1.msra.mxu0 %v127
    %346 = vmatprep.subr.mxu0 0.0
    %347 = vmatpush1.msra.mxu0 %v128
    %348 = vmatprep.subr.mxu0 0.0
    %349 = vmatpush1.msra.mxu0 %v129
    %350 = vmatprep.subr.mxu0 0.0
    %351 = vmatpush1.msra.mxu0 %v130
    %352 = vmatprep.subr.mxu0 0.0
    %353 = vmatpush1.msra.mxu0 %v131
    %354 = vmatprep.subr.mxu0 0.0
    %355 = vmatpush1.msra.mxu0 %v132
    %356 = vmatprep.subr.mxu0 0.0
    %357 = vmatpush1.msra.mxu0 %v133
    %358 = vmatprep.subr.mxu0 0.0
    %359 = vmatpush1.msra.mxu0 %v134
    %360 = vmatprep.subr.mxu0 0.0
    %361 = vmatpush1.msra.mxu0 %v135
    %362 = vmatprep.subr.mxu0 0.0
    %363 = vmatpush1.msra.mxu0 %v136
    %364 = vmatprep.subr.mxu0 0.0
    %365 = vmatpush1.msra.mxu0 %v137
    %366 = vmatprep.subr.mxu0 0.0
    %367 = vmatpush1.msra.mxu0 %v138
    %368 = vmatprep.subr.mxu0 0.0
    %369 = vmatpush1.msra.mxu0 %v139
    %370 = vmatprep.subr.mxu0 0.0
    %371 = vmatpush1.msra.mxu0 %v140
    %372 = vmatprep.subr.mxu0 0.0
    %373 = vmatpush1.msra.mxu0 %v141
    %374 = vmatprep.subr.mxu0 0.0
    %375 = vmatpush1.msra.mxu0 %v142
    %376 = vmatprep.subr.mxu0 0.0
    %377 = vmatpush1.msra.mxu0 %v143
    %378 = vmatprep.subr.mxu0 0.0
    %379 = vmatpush1.msra.mxu0 %v144
    %380 = vmatprep.subr.mxu0 0.0
    %381 = vmatpush1.msra.mxu0 %v145
    %382 = vmatprep.subr.mxu0 0.0
    %383 = vmatpush1.msra.mxu0 %v146
    %384 = vmatprep.mubr.f32.mxu0 %v169
    %385 = vmatmul.mubr.f32.gmra.mrb[0].mxu0 %v168
    %v386 = vpop.f32.mrb[0].mxu0
    %v387 = vadd.f32 %v317, %v386
    %v388 = vpop.f32.mrb[0].mxu0
    %389 = vdwg.mxu0
    %390 = vmatprep.subr.mxu0 0.0
    %391 = vmatpush1.msra.mxu0 %v147
    %392 = vmatprep.subr.mxu0 0.0
    %393 = vmatpush1.msra.mxu0 %v148
    %394 = vmatprep.subr.mxu0 0.0
    %395 = vmatpush1.msra.mxu0 0.0
    %396 = vmatprep.subr.mxu0 0.0
    %397 = vmatpush1.msra.mxu0 0.0
    %398 = vmatprep.subr.mxu0 0.0
    %399 = vmatpush1.msra.mxu0 0.0
    %400 = vmatprep.subr.mxu0 0.0
    %401 = vmatpush1.msra.mxu0 0.0
    %402 = vmatprep.subr.mxu0 0.0
    %403 = vmatpush1.msra.mxu0 0.0
    %404 = vmatprep.subr.mxu0 0.0
    %405 = vmatpush1.msra.mxu0 0.0
    %406 = vmatprep.subr.mxu0 0.0
    %407 = vmatpush1.msra.mxu0 0.0
    %408 = vmatprep.subr.mxu0 0.0
    %409 = vmatpush1.msra.mxu0 0.0
    %410 = vmatprep.subr.mxu0 0.0
    %411 = vmatpush1.msra.mxu0 0.0
    %412 = vmatprep.subr.mxu0 0.0
    %413 = vmatpush1.msra.mxu0 0.0
    %414 = vmatprep.subr.mxu0 0.0
    %415 = vmatpush1.msra.mxu0 0.0
    %416 = vmatprep.subr.mxu0 0.0
    %417 = vmatpush1.msra.mxu0 0.0
    %418 = vmatprep.subr.mxu0 0.0
    %419 = vmatpush1.msra.mxu0 0.0
    %420 = vmatprep.subr.mxu0 0.0
    %421 = vmatpush1.msra.mxu0 0.0
    %422 = vmatprep.subr.mxu0 0.0
    %423 = vmatpush1.msra.mxu0 0.0
    %424 = vmatprep.subr.mxu0 0.0
    %425 = vmatpush1.msra.mxu0 0.0
    %426 = vmatprep.subr.mxu0 0.0
    %427 = vmatpush1.msra.mxu0 0.0
    %428 = vmatprep.subr.mxu0 0.0
    %429 = vmatpush1.msra.mxu0 0.0
    %430 = vmatprep.subr.mxu0 0.0
    %431 = vmatpush1.msra.mxu0 0.0
    %432 = vmatprep.subr.mxu0 0.0
    %433 = vmatpush1.msra.mxu0 0.0
    %434 = vmatprep.subr.mxu0 0.0
    %435 = vmatpush1.msra.mxu0 0.0
    %436 = vmatprep.subr.mxu0 0.0
    %437 = vmatpush1.msra.mxu0 0.0
    %438 = vmatprep.subr.mxu0 0.0
    %439 = vmatpush1.msra.mxu0 0.0
    %440 = vmatprep.subr.mxu0 0.0
    %441 = vmatpush1.msra.mxu0 0.0
    %442 = vmatprep.subr.mxu0 0.0
    %443 = vmatpush1.msra.mxu0 0.0
    %444 = vmatprep.subr.mxu0 0.0
    %445 = vmatpush1.msra.mxu0 0.0
    %446 = vmatprep.subr.mxu0 0.0
    %447 = vmatpush1.msra.mxu0 0.0
    %448 = vmatprep.subr.mxu0 0.0
    %449 = vmatpush1.msra.mxu0 0.0
    %450 = vmatprep.subr.mxu0 0.0
    %451 = vmatpush1.msra.mxu0 0.0
    %452 = vmatprep.subr.mxu0 0.0
    %453 = vmatpush1.msra.mxu0 0.0
    %454 = vmatprep.mubr.f32.mxu0 0.0
    %455 = vmatmul.mubr.f32.gmra.mrb[0].mxu0 %v178
    %v456 = vpop.f32.mrb[0].mxu0
    %v457 = vadd.f32 %v387, %v456
    %v458 = vpop.f32.mrb[0].mxu0
    %459 = vdwg.mxu0
    %v460 = vxor.u32 %v457, 2147483648
    %v461 = vmul.f32 %v460, 1.442695
    %v462 = vpow.pop %v461
    %v463 = vadd.f32 %v462, 1.0
    %v464 = vrcp.pop %v463
    %v465 = vmul.f32 1.0, %v464
    %466 = vst [vmem:[#allocation7] sm:$0xff] %v465
    // Predicated region
    $region22: #{forward.1} parent=1 // pred_check
      _
    $region23: #{forward.1} parent=1 // pred_check_branch
      %468 = sbr.rel (0) target = $region25
    $region24: #{forward.1} parent=1 // pred_region
      %s470 = ssub.s32 128, 64
      %471 = vsyncadd [#allocation4], %s470
      %s472 = sshll.u32 [#allocation7], 4
      %s473 = int_to_ptr.vmem [resolvable:$true] %s472
      %478 = dma.vmem_to_hbm [thread:$0]  %s473, 64, %s3, [#allocation4], 64, 64, 4
    $region25: #{forward.1} parent=1 // pred_fallthru
      _
    // Predicated region
    $region26: #{forward.1} parent=1 // pred_check
      _
    $region27: #{forward.1} parent=1 // pred_check_branch
      %480 = sbr.rel (0) target = $region29
    $region28: #{forward.1} parent=1 // pred_region
      %481 = dma.done [#allocation4], 128
    $region29: #{forward.1} parent=1 // pred_fallthru
      _
    %482 = vsyncpa [#allocation3], 1
    %483 = vsyncpa [#allocation6], 1
    %484 = vsyncpa [#allocation4], 1

</llo_original>
